<compile_context>
chip_gen: v7x
topology: tpu7x:2x2x1
jax: 0.10.0
libtpu: 0.0.40
codegen_flags: <defaults>
</compile_context>

<pallas_src>
import jax
import jax.numpy as jnp
from jax.experimental import pallas as pl
from jax.experimental.pallas import tpu as pltpu

_LANES = 128
_MAX_TILE_ROWS = 1024   # 1024x128 f32 tile = 512 KiB (1 MiB double-buffered)
_MAX_PARTS = 2          # leading 'parallel' axis for multi-TC chips (v7x)


def _elem_loss(x, gan_type, target_val, sign):
    """Per-element loss; `x` is float32."""
    if gan_type in ("gan", "ragan"):
        # BCEWithLogitsLoss, numerically-stable form (matches PyTorch):
        #   max(x, 0) - x * t + log(1 + exp(-|x|))
        e = jnp.maximum(x, 0.0) + jnp.log1p(jnp.exp(-jnp.abs(x)))
        if target_val != 0.0:           # skip the VPU mul for the fake label
            e = e - x * target_val
        return e
    if gan_type == "lsgan":
        d = x - target_val
        return d * d
    if gan_type == "wgan-gp":
        # sign = -1 for real targets, +1 for fake targets
        return sign * x
    raise NotImplementedError(f"GAN type [{gan_type}] is not found")


def _make_kernel(gan_type, target_val, sign, rows_valid, tile_rows, steps,
                 needs_mask):
    folds = tile_rows // 8

    def fold(v):
        # (tile_rows, 128) -> (8, 128): adds of stacked vregs, pure VPU.
        return jnp.sum(v.reshape(folds, 8, _LANES), axis=0)

    def kernel(x_ref, o_ref, acc_ref):
        p = pl.program_id(0)
        i = pl.program_id(1)

        @pl.when(i == 0)
        def _():
            acc_ref[...] = jnp.zeros_like(acc_ref)

        x = x_ref[...].astype(jnp.float32)
        elem = _elem_loss(x, gan_type, target_val, sign)

        if needs_mask:
            block = p * steps + i
            is_partial = (block + 1) * tile_rows > rows_valid

            @pl.when(jnp.logical_not(is_partial))
            def _():
                acc_ref[...] += fold(elem)

            @pl.when(is_partial)
            def _():
                row_ids = block * tile_rows + jax.lax.broadcasted_iota(
                    jnp.int32, (tile_rows, _LANES), 0)
                acc_ref[...] += fold(jnp.where(row_ids < rows_valid, elem, 0.0))
        else:
            acc_ref[...] += fold(elem)

        @pl.when(i == steps - 1)
        def _():
            o_ref[...] = acc_ref[...]

    return kernel


def gan_loss(x, target_is_real, gan_type="gan",
             real_label_val=1.0, fake_label_val=0.0):
    """JAX/Pallas equivalent of GANLoss(gan_type, ...)(x, target_is_real)."""
    gan_type = gan_type.lower()
    if gan_type == "wgan-gp":
        sign = -1.0 if target_is_real else 1.0
        target_val = 0.0
    else:
        sign = 1.0
        target_val = float(real_label_val) if target_is_real else float(fake_label_val)

    n = int(x.size)
    flat = jnp.ravel(x)                        # free reshape, native dtype

    if n < 8 * _LANES:
        # Tiny input: not worth a kernel launch, plain jnp.
        vals = _elem_loss(flat.astype(jnp.float32), gan_type, target_val, sign)
        return jnp.sum(vals) / jnp.float32(n)

    rows = n // _LANES
    rem = n - rows * _LANES

    # Elements that don't fill a whole 128-lane row: tiny, summed in jnp.
    tail_sum = jnp.float32(0.0)
    if rem:
        tail = flat[rows * _LANES:].astype(jnp.float32)
        tail_sum = jnp.sum(_elem_loss(tail, gan_type, target_val, sign))

    # Lane-dense 2-D view of the bulk (free when n % 128 == 0).
    x2d = flat[: rows * _LANES].reshape(rows, _LANES)

    tile_rows = min(_MAX_TILE_ROWS, max(8, (rows // 8) * 8))
    blocks = pl.cdiv(rows, tile_rows)
    parts = _MAX_PARTS if blocks >= _MAX_PARTS else 1
    steps = pl.cdiv(blocks, parts)
    needs_mask = (parts * steps * tile_rows != rows)

    def x_index_map(p, i):
        # Clamp: block slots past the data re-read the last real block; their
        # contribution is zeroed by the in-kernel row mask.
        return (jnp.minimum(p * steps + i, blocks - 1), 0)

    kernel = _make_kernel(gan_type, target_val, sign, rows, tile_rows, steps,
                          needs_mask)

    partials = pl.pallas_call(
        kernel,
        out_shape=jax.ShapeDtypeStruct((parts * 8, _LANES), jnp.float32),
        grid_spec=pltpu.PrefetchScalarGridSpec(
            num_scalar_prefetch=0,
            grid=(parts, steps),
            in_specs=[pl.BlockSpec((tile_rows, _LANES), x_index_map)],
            out_specs=pl.BlockSpec((8, _LANES), lambda p, i: (p, 0)),
            scratch_shapes=[pltpu.VMEM((8, _LANES), jnp.float32)],
        ),
        compiler_params=pltpu.CompilerParams(
            dimension_semantics=("parallel", "arbitrary")),
    )(x2d)

    total = jnp.sum(partials) + tail_sum
    return total / jnp.float32(n)


def _reference_loss(x, target_is_real, gan_type,
                    real_label_val=1.0, fake_label_val=0.0):
    """Pure-JAX reference mirroring the PyTorch module, for verification."""
    x = x.astype(jnp.float32)
    gan_type = gan_type.lower()
    if gan_type == "wgan-gp":
        return -jnp.mean(x) if target_is_real else jnp.mean(x)
    t = jnp.full_like(x, real_label_val if target_is_real else fake_label_val)
    if gan_type in ("gan", "ragan"):
        elem = jnp.maximum(x, 0.0) - x * t + jnp.log1p(jnp.exp(-jnp.abs(x)))
        return jnp.mean(elem)
    if gan_type == "lsgan":
        return jnp.mean((x - t) ** 2)
    raise NotImplementedError(gan_type)


if __name__ == "__main__":
    key = jax.random.PRNGKey(0)
    shapes = [
        (2, 4, 16, 16),     # primary small NCHW discriminator logits
        (2, 8, 128, 96),    # exercises 2-way 'parallel' split + row masking
        (1, 3, 50, 37),     # exercises n % 128 tail handling
    ]
    keys = jax.random.split(key, len(shapes))

    ok = True
    for shp, k in zip(shapes, keys):
        x = jax.random.normal(k, shp, dtype=jnp.float32)
        for gan_type in ("gan", "ragan", "lsgan", "wgan-gp"):
            for target_is_real in (True, False):
                out = jax.block_until_ready(
                    gan_loss(x, target_is_real, gan_type=gan_type))
                ref = _reference_loss(x, target_is_real, gan_type)
                if not jnp.allclose(out, ref, atol=1e-5, rtol=1e-5):
                    ok = False
                    print(f"MISMATCH shape={shp} gan_type={gan_type} "
                          f"real={target_is_real}: {out} vs {ref}")

    if ok:
        print("KERNEL_OK")
</pallas_src>

<mosaic_0001>
module attributes {stable_mosaic.version = 11 : i64} {
  func.func @kernel(%arg0: i32, %arg1: i32, %arg2: memref<16x128xf32, #tpu.memory_space<vmem>>, %arg3: memref<8x128xf32, #tpu.memory_space<vmem>>, %arg4: memref<8x128xf32, #tpu.memory_space<vmem>>) attributes {dimension_semantics = [#tpu.dimension_semantics<parallel>, #tpu.dimension_semantics<arbitrary>], iteration_bounds = array<i64: 1, 1>, scalar_prefetch = 0 : i64, scratch_operands = 1 : i64, tpu.core_type = #tpu.core_type<tc>, window_params = [{transform_indices = @transform_0, window_bounds = array<i64: 16, 128>}, {transform_indices = @transform_1, window_bounds = array<i64: 8, 128>}]} {
    %c0_i32 = arith.constant 0 : i32
    %0 = arith.cmpi eq, %arg1, %c0_i32 : i32
    %1 = arith.extui %0 : i1 to i32
    %c0_i32_0 = arith.constant 0 : i32
    %2 = arith.cmpi ne, %1, %c0_i32_0 : i32
    scf.if %2 {
      %cst_11 = arith.constant 0.000000e+00 : f32
      %23 = vector.broadcast %cst_11 : f32 to vector<8x128xf32>
      %c0_12 = arith.constant 0 : index
      %c0_13 = arith.constant 0 : index
      %24 = vector.load %arg4[%c0_12, %c0_13] : memref<8x128xf32, #tpu.memory_space<vmem>>, vector<8x128xf32>
      tpu.vector_store %arg4[%c0_12, %c0_13], %23 {strides = array<i32>} : memref<8x128xf32, #tpu.memory_space<vmem>>, vector<8x128xf32>,
    } else {
    }
    %c0 = arith.constant 0 : index
    %c0_1 = arith.constant 0 : index
    %3 = vector.load %arg2[%c0, %c0_1] : memref<16x128xf32, #tpu.memory_space<vmem>>, vector<16x128xf32>
    %cst = arith.constant 0.000000e+00 : f32
    %4 = vector.broadcast %cst : f32 to vector<16x128xf32>
    %5 = arith.maximumf %3, %4 : vector<16x128xf32>
    %6 = math.absf %3 : vector<16x128xf32>
    %cst_2 = arith.constant 0.000000e+00 : f32
    %7 = vector.broadcast %cst_2 : f32 to vector<16x128xf32>
    %8 = arith.subf %7, %6 : vector<16x128xf32>
    %9 = math.exp %8 : vector<16x128xf32>
    %10 = math.log1p %9 : vector<16x128xf32>
    %11 = arith.addf %5, %10 : vector<16x128xf32>
    %cst_3 = arith.constant 1.000000e+00 : f32
    %12 = vector.broadcast %cst_3 : f32 to vector<16x128xf32>
    %13 = arith.mulf %3, %12 : vector<16x128xf32>
    %14 = arith.subf %11, %13 : vector<16x128xf32>
    %c0_4 = arith.constant 0 : index
    %c0_5 = arith.constant 0 : index
    %15 = vector.load %arg4[%c0_4, %c0_5] : memref<8x128xf32, #tpu.memory_space<vmem>>, vector<8x128xf32>
    %16 = vector.shape_cast %14 : vector<16x128xf32> to vector<2x8x128xf32>
    %cst_6 = arith.constant dense<0.000000e+00> : vector<8x128xf32>
    %17 = vector.multi_reduction <add>, %16, %cst_6 [0] : vector<2x8x128xf32> to vector<8x128xf32>
    %18 = arith.addf %15, %17 : vector<8x128xf32>
    %c0_7 = arith.constant 0 : index
    %c0_8 = arith.constant 0 : index
    %19 = vector.load %arg4[%c0_7, %c0_8] : memref<8x128xf32, #tpu.memory_space<vmem>>, vector<8x128xf32>
    tpu.vector_store %arg4[%c0_7, %c0_8], %18 {strides = array<i32>} : memref<8x128xf32, #tpu.memory_space<vmem>>, vector<8x128xf32>,
    %c0_i32_9 = arith.constant 0 : i32
    %20 = arith.cmpi eq, %arg1, %c0_i32_9 : i32
    %21 = arith.extui %20 : i1 to i32
    %c0_i32_10 = arith.constant 0 : i32
    %22 = arith.cmpi ne, %21, %c0_i32_10 : i32
    scf.if %22 {
      %c0_11 = arith.constant 0 : index
      %c0_12 = arith.constant 0 : index
      %23 = vector.load %arg4[%c0_11, %c0_12] : memref<8x128xf32, #tpu.memory_space<vmem>>, vector<8x128xf32>
      %c0_13 = arith.constant 0 : index
      %c0_14 = arith.constant 0 : index
      %24 = vector.load %arg3[%c0_13, %c0_14] : memref<8x128xf32, #tpu.memory_space<vmem>>, vector<8x128xf32>
      tpu.vector_store %arg3[%c0_13, %c0_14], %23 {strides = array<i32>} : memref<8x128xf32, #tpu.memory_space<vmem>>, vector<8x128xf32>,
    } else {
    }
    return
  }
  func.func @transform_0(%arg0: i32, %arg1: i32) -> (i32, i32) {
    %c1_i32 = arith.constant 1 : i32
    %0 = arith.muli %arg0, %c1_i32 : i32
    %1 = arith.addi %0, %arg1 : i32
    %c0_i32 = arith.constant 0 : i32
    %2 = arith.minsi %1, %c0_i32 : i32
    %c0_i32_0 = arith.constant 0 : i32
    %c0_i32_1 = arith.constant 0 : i32
    return %2, %c0_i32_0 : i32, i32
  }
  func.func @transform_1(%arg0: i32, %arg1: i32) -> (i32, i32) {
    %c0_i32 = arith.constant 0 : i32
    %c0_i32_0 = arith.constant 0 : i32
    return %arg0, %c0_i32 : i32, i32
  }
}

</mosaic_0001>

<llo_original>
// kernel: tpu_custom_call.1
$region0: #{tpu_custom_call.1}
  #allocation0 [shape = 'u32[]', space=smem, size = 0x4, offset = 0x4, fixed_abs, tag = 'smem constant byte address 0x4 - core index']
  #allocation1 [shape = 'u32[144,128]{1,0:T(1,128)}', space=vmem, size = 0x12000, scoped, tag = 'internal scratch']
  #allocation2 [shape = 'f32[8,128]{1,0:T(8,128)}', space=vmem, size = 0x1000, scoped, tag = 'scratch operand']
  %s0 = inlined_call_operand.hbm [shape: f32[16,128], index: 0, kind: input, shape index: {}]
  %s1 = inlined_call_operand.hbm [shape: f32[8,128], index: 1, kind: output, shape index: {}]
  %s2 = sld [smem:[#allocation0]]
  $region26: #{tpu_custom_call.1} parent=0
    _
  %s4 = ssub.s32 1, %s2
  %s5 = scalar_select 0, %s4, %s2
  $region1: #{tpu_custom_call.1} parent=0
    #allocation3 [shape = 'u8[8192]{0}', space=vmem, size = 0x2000, scoped, tag = 'input window, operand 0, single buffered']
    #allocation4 [shape = 's32[1]{0}', space=sflag, size = 0x4, scoped, tag = 'scoped memory for tpu_custom_call.1']
    #allocation5 [shape = 's32[1]{0}', space=sflag, size = 0x4, scoped, tag = 'scoped memory for tpu_custom_call.1']
    #allocation6 [shape = 'u8[4096]{0}', space=vmem, size = 0x1000, scoped, tag = 'output window, operand 0, single buffered']
    %6 = vsyncpa [#allocation4], 0
    %7 = vsyncpa [#allocation5], 0
    // Predicated region
    $region2: #{tpu_custom_call.1} parent=1 // pred_check
      _
    $region3: #{tpu_custom_call.1} parent=1 // pred_check_branch
      %9 = sbr.rel (0) target = $region5
    $region4: #{tpu_custom_call.1} parent=1 // pred_region
      %s10 = sadd.s32 0, 0
      %p11 = scmp.lt.s32.totalorder %s10, 0
      %s12 = scalar_select %p11, %s10, 0
      %s13 = smul.u32 2, %s12
      %s15 = ssub.s32 256, 256
      %16 = vsyncadd [#allocation4], %s15
      %s17 = smul.addr %s13, 128
      %s18 = scalar_lea.hbm %s0, %s17
      %s19 = sshll.u32 [#allocation3], 4
      %s20 = int_to_ptr.vmem [resolvable:$true] %s19
      %25 = dma.hbm_to_vmem [thread:$0]  %s18, 256, %s20, [#allocation4], 128, 128, 8
    $region5: #{tpu_custom_call.1} parent=1 // pred_fallthru
      _
    // Predicated region
    $region6: #{tpu_custom_call.1} parent=1 // pred_check
      _
    $region7: #{tpu_custom_call.1} parent=1 // pred_check_branch
      %27 = sbr.rel (0) target = $region9
    $region8: #{tpu_custom_call.1} parent=1 // pred_region
      %28 = dma.done [#allocation4], 256
    $region9: #{tpu_custom_call.1} parent=1 // pred_fallthru
      _
    %s29 = sadd.s32 0, 0
    %p30 = scmp.lt.s32.totalorder %s29, 0
    %s31 = scalar_select %p30, %s29, 0
    %s32 = smul.u32 2, %s31
    %p33 = scmp.eq.s32.totalorder 0, 0
    // Predicated region
    $region10: #{tpu_custom_call.1} parent=1 // pred_check
      %p34 = pneg %p33
    $region11: #{tpu_custom_call.1} parent=1 // pred_check_branch
      %36 = sbr.rel (%p34) target = $region13
    $region12: #{tpu_custom_call.1} parent=1 // pred_region
      %37 = vst [vmem:[#allocation2] sm:$0xff] 0.0
    $region13: #{tpu_custom_call.1} parent=1 // pred_fallthru
      _
    %v38 = vld [vmem:[#allocation3] sm:$0xff]
    %v39 = vld [vmem:[#allocation3 + $0x8] sm:$0xff]
    %v40 = vmax.f32 %v38, 0.0
    %v41 = vmax.f32 %v39, 0.0
    %v42 = vand.u32 2147483647, %v38
    %v43 = vand.u32 2147483647, %v39
    %v44 = vsub.f32 0.0, %v42
    %v45 = vsub.f32 0.0, %v43
    %v46 = vmul.f32 %v44, 1.442695
    %v47 = vpow.pop %v46
    %v48 = vmul.f32 %v45, 1.442695
    %v49 = vpow.pop %v48
    %v50 = vadd.f32 %v47, 1.0
    %v51 = vlog2.pop %v50
    %v52 = vmul.f32 %v51, 0.6931472
    %v53 = vmul.f32 -0.5, %v47
    %v54 = vadd.f32 %v53, 1.0
    %v55 = vmul.f32 %v54, %v47
    %v56 = vand.u32 2147483647, %v47
    %vm57 = vcmp.lt.f32.partialorder %v56, 0.0004427343
    %v58 = vsel %vm57, %v55, %v52
    %v59 = vadd.f32 %v49, 1.0
    %v60 = vlog2.pop %v59
    %v61 = vmul.f32 %v60, 0.6931472
    %v62 = vmul.f32 -0.5, %v49
    %v63 = vadd.f32 %v62, 1.0
    %v64 = vmul.f32 %v63, %v49
    %v65 = vand.u32 2147483647, %v49
    %vm66 = vcmp.lt.f32.partialorder %v65, 0.0004427343
    %v67 = vsel %vm66, %v64, %v61
    %v68 = vadd.f32 %v40, %v58
    %v69 = vadd.f32 %v41, %v67
    %v70 = vsub.f32 %v68, %v38
    %v71 = vsub.f32 %v69, %v39
    %v72 = vld [vmem:[#allocation2] sm:$0xff]
    %v73 = vadd.f32 %v70, %v71
    %v74 = vadd.f32 %v72, %v73
    %75 = vst [vmem:[#allocation2] sm:$0xff] %v74
    // Predicated region
    $region14: #{tpu_custom_call.1} parent=1 // pred_check
      %p76 = pneg %p33
    $region15: #{tpu_custom_call.1} parent=1 // pred_check_branch
      %78 = sbr.rel (%p76) target = $region17
    $region16: #{tpu_custom_call.1} parent=1 // pred_region
      %v79 = vld [vmem:[#allocation2] sm:$0xff]
      %80 = vst [vmem:[#allocation6] sm:$0xff] %v79
    $region17: #{tpu_custom_call.1} parent=1 // pred_fallthru
      _
    // Predicated region
    $region18: #{tpu_custom_call.1} parent=1 // pred_check
      _
    $region19: #{tpu_custom_call.1} parent=1 // pred_check_branch
      %82 = sbr.rel (0) target = $region21
    $region20: #{tpu_custom_call.1} parent=1 // pred_region
      %s84 = ssub.s32 128, 128
      %85 = vsyncadd [#allocation5], %s84
      %s87 = sshll.u32 [#allocation6], 4
      %s88 = int_to_ptr.vmem [resolvable:$true] %s87
      %90 = dma.vmem_to_hbm [thread:$0]  %s88, 128, %s1, [#allocation5]
    $region21: #{tpu_custom_call.1} parent=1 // pred_fallthru
      _
    // Predicated region
    $region22: #{tpu_custom_call.1} parent=1 // pred_check
      _
    $region23: #{tpu_custom_call.1} parent=1 // pred_check_branch
      %92 = sbr.rel (0) target = $region25
    $region24: #{tpu_custom_call.1} parent=1 // pred_region
      %93 = dma.done [#allocation5], 128
    $region25: #{tpu_custom_call.1} parent=1 // pred_fallthru
      _
    %94 = vsyncpa [#allocation4], 1
    %95 = vsyncpa [#allocation5], 1

</llo_original>
